<compile_context>
chip_gen: v6e
topology: v6e:2x2x1
jax: 0.10.0
libtpu: 0.0.40
codegen_flags: <defaults>
</compile_context>

<pallas_src>
import functools

import jax
import jax.numpy as jnp
from jax.experimental import pallas as pl
from jax.experimental.pallas import tpu as pltpu

LANE = 128          # vreg lane width — all feature dims padded to this
SUBLANE_BF16 = 16   # bf16 packs 16 rows per vreg tile -> batch-tile multiple
MAX_TB = 1024       # batch tile cap: ~0.5 MiB bf16 in/out tiles, well in VMEM
MIN_SPLIT_B = 512   # above this, force >=2 grid steps so v7x's 2nd TC has work


def _round_up(n, m):
    return (n + m - 1) // m * m


def _batch_tiling(batch):
    """Pick (tb, padded_batch, n_tiles).

    tb is a multiple of 16 (bf16 packed sublane tile), batch padding is at most
    one sublane group per tile, and for training-sized batches the grid has an
    even number (>=2) of steps so the "parallel" axis splits across v7x's two
    TensorCores. Tiny inference batches keep grid=(1,) (no per-step overhead).
    """
    n_tiles = max(pl.cdiv(batch, MAX_TB), 2 if batch >= MIN_SPLIT_B else 1)
    if n_tiles > 1 and n_tiles % 2:
        n_tiles += 1                      # even step count -> balanced megacore
    tb = _round_up(pl.cdiv(batch, n_tiles), SUBLANE_BF16)
    return tb, n_tiles * tb, n_tiles


def qnet_kernel(x_ref, w1_ref, b1_ref, w2_ref, b2_ref, o_ref):
    # x / w1 / w2 are bf16 (MXU-native operands); accumulate + epilogue in f32.
    h = jnp.dot(x_ref[...], w1_ref[...],
                preferred_element_type=jnp.float32)             # (TB, HID_P) f32
    h = jnp.maximum(h + b1_ref[...], 0.0)                       # bias + ReLU (VPU)
    y = jnp.dot(h.astype(jnp.bfloat16), w2_ref[...],
                preferred_element_type=jnp.float32)             # (TB, OUT_P) f32
    o_ref[...] = (y + b2_ref[...]).astype(o_ref.dtype)          # bf16 writeback


def prepare_params(w1, b1, w2, b2):
    """Pad + cast the static parameters ONCE (at init / after a param update).

    Weights are stored (in, out) — the transpose of PyTorch's (out, in) —
    so the kernel computes plain x @ W + b on the MXU. Padded rows/columns are
    zero, which provably leaves x @ W + b unchanged on the real columns.
    """
    in_size, hid_size = w1.shape
    out_size = w2.shape[1]
    in_p = _round_up(in_size, LANE)
    hid_p = _round_up(hid_size, LANE)
    out_p = _round_up(out_size, LANE)

    w1_p = jnp.zeros((in_p, hid_p), jnp.bfloat16).at[:in_size, :hid_size].set(
        w1.astype(jnp.bfloat16))
    b1_p = jnp.zeros((1, hid_p), jnp.float32).at[0, :hid_size].set(
        b1.astype(jnp.float32))
    w2_p = jnp.zeros((hid_p, out_p), jnp.bfloat16).at[:hid_size, :out_size].set(
        w2.astype(jnp.bfloat16))
    b2_p = jnp.zeros((1, out_p), jnp.float32).at[0, :out_size].set(
        b2.astype(jnp.float32))
    return w1_p, b1_p, w2_p, b2_p


@functools.partial(jax.jit, static_argnames=("out_size",))
def linear_qnet_forward(x, w1_p, b1_p, w2_p, b2_p, *, out_size):
    """x: (B, in_size) f32; padded params from prepare_params(); -> (B, out_size)."""
    batch, in_size = x.shape
    in_p, hid_p = w1_p.shape
    out_p = w2_p.shape[1]

    tb, b_p, n_tiles = _batch_tiling(batch)

    # Only x is padded/cast per call; this fuses into the same jit executable.
    x_p = jnp.zeros((b_p, in_p), jnp.bfloat16).at[:batch, :in_size].set(
        x.astype(jnp.bfloat16))

    out_padded = pl.pallas_call(
        qnet_kernel,
        out_shape=jax.ShapeDtypeStruct((b_p, out_p), jnp.bfloat16),
        grid=(n_tiles,),
        in_specs=[
            pl.BlockSpec((tb, in_p), lambda i: (i, 0)),       # x: tiled on batch
            pl.BlockSpec((in_p, hid_p), lambda i: (0, 0)),    # w1: VMEM-resident
            pl.BlockSpec((1, hid_p), lambda i: (0, 0)),       # b1: VMEM-resident
            pl.BlockSpec((hid_p, out_p), lambda i: (0, 0)),   # w2: VMEM-resident
            pl.BlockSpec((1, out_p), lambda i: (0, 0)),       # b2: VMEM-resident
        ],
        out_specs=pl.BlockSpec((tb, out_p), lambda i: (i, 0)),
        compiler_params=pltpu.CompilerParams(
            dimension_semantics=("parallel",)),               # megacore on v7x
    )(x_p, w1_p, b1_p, w2_p, b2_p)

    # Slice the real rows/cols off outside the kernel (lane-dense bf16 store
    # inside), then cast back to the caller's dtype.
    return out_padded[:batch, :out_size].astype(x.dtype)


def init_params(key, input_size, hidden_size, output_size):
    """Deterministic init mirroring nn.Linear's U(-1/sqrt(fan_in), 1/sqrt(fan_in))."""
    k1, k2, k3, k4 = jax.random.split(key, 4)
    lim1 = 1.0 / (input_size ** 0.5)
    lim2 = 1.0 / (hidden_size ** 0.5)
    # Stored as (in, out) = transpose of PyTorch's (out, in) weight layout.
    w1 = jax.random.uniform(k1, (input_size, hidden_size), jnp.float32, -lim1, lim1)
    b1 = jax.random.uniform(k2, (hidden_size,), jnp.float32, -lim1, lim1)
    w2 = jax.random.uniform(k3, (hidden_size, output_size), jnp.float32, -lim2, lim2)
    b2 = jax.random.uniform(k4, (output_size,), jnp.float32, -lim2, lim2)
    return w1, b1, w2, b2


# TODO(synk): Linear_QNet.save()/load() are host-side checkpoint file I/O and
# have no kernel equivalent; intentionally not implemented.

if __name__ == "__main__":
    # Snake-game Q-net sizes: state=11, hidden=32, actions=3.
    input_size, hidden_size, output_size = 11, 32, 3
    batch = 8

    key = jax.random.PRNGKey(0)
    kx, kp = jax.random.split(key)
    x = jax.random.normal(kx, (batch, input_size), jnp.float32)
    w1, b1, w2, b2 = init_params(kp, input_size, hidden_size, output_size)

    # Pad/cast the static parameters once (hoisted out of the forward path).
    padded_params = prepare_params(w1, b1, w2, b2)

    out = linear_qnet_forward(x, *padded_params, out_size=output_size)
    out = jax.block_until_ready(out)

    # Pure-JAX f32 reference of the same forward pass. The kernel uses bf16 MXU
    # operands + bf16 output with f32 accumulation, so allow bf16-level tolerance.
    ref = jnp.maximum(x @ w1 + b1, 0.0) @ w2 + b2
    assert out.shape == (batch, output_size)
    assert out.dtype == x.dtype
    assert jnp.allclose(out, ref, atol=2.5e-2, rtol=2.5e-2), (
        f"max abs err = {jnp.max(jnp.abs(out - ref))}")

    print("KERNEL_OK")
</pallas_src>

<mosaic_0001>
module attributes {stable_mosaic.version = 11 : i64} {
  func.func @qnet_kernel(%arg0: i32, %arg1: memref<16x128xbf16, #tpu.memory_space<vmem>>, %arg2: memref<128x128xbf16, #tpu.memory_space<vmem>>, %arg3: memref<1x128xf32, #tpu.memory_space<vmem>>, %arg4: memref<128x128xbf16, #tpu.memory_space<vmem>>, %arg5: memref<1x128xf32, #tpu.memory_space<vmem>>, %arg6: memref<16x128xbf16, #tpu.memory_space<vmem>>) attributes {dimension_semantics = [#tpu.dimension_semantics<parallel>], iteration_bounds = array<i64: 1>, scalar_prefetch = 0 : i64, scratch_operands = 0 : i64, tpu.core_type = #tpu.core_type<tc>, window_params = [{transform_indices = @transform_0, window_bounds = array<i64: 16, 128>}, {pipeline_mode = #tpu.pipeline_mode<synchronous>, transform_indices = @transform_1, window_bounds = array<i64: 128, 128>}, {pipeline_mode = #tpu.pipeline_mode<synchronous>, transform_indices = @transform_2, window_bounds = array<i64: 1, 128>}, {pipeline_mode = #tpu.pipeline_mode<synchronous>, transform_indices = @transform_3, window_bounds = array<i64: 128, 128>}, {pipeline_mode = #tpu.pipeline_mode<synchronous>, transform_indices = @transform_4, window_bounds = array<i64: 1, 128>}, {transform_indices = @transform_5, window_bounds = array<i64: 16, 128>}]} {
    %c0 = arith.constant 0 : index
    %c0_0 = arith.constant 0 : index
    %0 = vector.load %arg1[%c0, %c0_0] : memref<16x128xbf16, #tpu.memory_space<vmem>>, vector<16x128xbf16>
    %c0_1 = arith.constant 0 : index
    %c0_2 = arith.constant 0 : index
    %1 = vector.load %arg2[%c0_1, %c0_2] : memref<128x128xbf16, #tpu.memory_space<vmem>>, vector<128x128xbf16>
    %cst = arith.constant dense<0.000000e+00> : vector<16x128xf32>
    %2 = tpu.matmul %0, %1, %cst {dimension_numbers = #tpu.dot_dimension_numbers<[1], [0], [0], [1], [0, 0, 1, 1], [], []>} : vector<16x128xbf16>, vector<128x128xbf16>, vector<16x128xf32> -> vector<16x128xf32>
    %c0_3 = arith.constant 0 : index
    %c0_4 = arith.constant 0 : index
    %3 = vector.load %arg3[%c0_3, %c0_4] : memref<1x128xf32, #tpu.memory_space<vmem>>, vector<1x128xf32>
    %4 = vector.broadcast %3 : vector<1x128xf32> to vector<16x128xf32>
    %5 = arith.addf %2, %4 : vector<16x128xf32>
    %cst_5 = arith.constant 0.000000e+00 : f32
    %6 = vector.broadcast %cst_5 : f32 to vector<16x128xf32>
    %7 = arith.maximumf %5, %6 : vector<16x128xf32>
    %8 = arith.truncf %7 : vector<16x128xf32> to vector<16x128xbf16>
    %c0_6 = arith.constant 0 : index
    %c0_7 = arith.constant 0 : index
    %9 = vector.load %arg4[%c0_6, %c0_7] : memref<128x128xbf16, #tpu.memory_space<vmem>>, vector<128x128xbf16>
    %cst_8 = arith.constant dense<0.000000e+00> : vector<16x128xf32>
    %10 = tpu.matmul %8, %9, %cst_8 {dimension_numbers = #tpu.dot_dimension_numbers<[1], [0], [0], [1], [0, 0, 1, 1], [], []>} : vector<16x128xbf16>, vector<128x128xbf16>, vector<16x128xf32> -> vector<16x128xf32>
    %c0_9 = arith.constant 0 : index
    %c0_10 = arith.constant 0 : index
    %11 = vector.load %arg5[%c0_9, %c0_10] : memref<1x128xf32, #tpu.memory_space<vmem>>, vector<1x128xf32>
    %12 = vector.broadcast %11 : vector<1x128xf32> to vector<16x128xf32>
    %13 = arith.addf %10, %12 : vector<16x128xf32>
    %14 = arith.truncf %13 : vector<16x128xf32> to vector<16x128xbf16>
    %c0_11 = arith.constant 0 : index
    %c0_12 = arith.constant 0 : index
    %15 = vector.load %arg6[%c0_11, %c0_12] : memref<16x128xbf16, #tpu.memory_space<vmem>>, vector<16x128xbf16>
    tpu.vector_store %arg6[%c0_11, %c0_12], %14 {strides = array<i32>} : memref<16x128xbf16, #tpu.memory_space<vmem>>, vector<16x128xbf16>,
    return
  }
  func.func @transform_0(%arg0: i32) -> (i32, i32) {
    %c0_i32 = arith.constant 0 : i32
    %c0_i32_0 = arith.constant 0 : i32
    return %arg0, %c0_i32 : i32, i32
  }
  func.func @transform_1(%arg0: i32) -> (i32, i32) {
    %c0_i32 = arith.constant 0 : i32
    %c0_i32_0 = arith.constant 0 : i32
    %c0_i32_1 = arith.constant 0 : i32
    return %c0_i32, %c0_i32_0 : i32, i32
  }
  func.func @transform_2(%arg0: i32) -> (i32, i32) {
    %c0_i32 = arith.constant 0 : i32
    %c0_i32_0 = arith.constant 0 : i32
    %c0_i32_1 = arith.constant 0 : i32
    return %c0_i32, %c0_i32_0 : i32, i32
  }
  func.func @transform_3(%arg0: i32) -> (i32, i32) {
    %c0_i32 = arith.constant 0 : i32
    %c0_i32_0 = arith.constant 0 : i32
    %c0_i32_1 = arith.constant 0 : i32
    return %c0_i32, %c0_i32_0 : i32, i32
  }
  func.func @transform_4(%arg0: i32) -> (i32, i32) {
    %c0_i32 = arith.constant 0 : i32
    %c0_i32_0 = arith.constant 0 : i32
    %c0_i32_1 = arith.constant 0 : i32
    return %c0_i32, %c0_i32_0 : i32, i32
  }
  func.func @transform_5(%arg0: i32) -> (i32, i32) {
    %c0_i32 = arith.constant 0 : i32
    %c0_i32_0 = arith.constant 0 : i32
    return %arg0, %c0_i32 : i32, i32
  }
}

</mosaic_0001>

<llo_original>
// kernel: linear_qnet_forward.1
$region0: #{linear_qnet_forward.1}
  #allocation0 [shape = 'u32[]', space=smem, size = 0x4, offset = 0x4, fixed_abs, tag = 'smem constant byte address 0x4 - core index']
  #allocation1 [shape = 'u32[144,128]{1,0:T(1,128)}', space=vmem, size = 0x12000, scoped, tag = 'internal scratch']
  %s0 = inlined_call_operand.vmem [shape: bf16[16,128], index: 0, kind: input, shape index: {}]
  %s1 = inlined_call_operand.hbm [shape: bf16[128,128], index: 1, kind: input, shape index: {}]
  %s2 = inlined_call_operand.vmem [shape: f32[1,128], index: 2, kind: input, shape index: {}]
  %s3 = inlined_call_operand.hbm [shape: bf16[128,128], index: 3, kind: input, shape index: {}]
  %s4 = inlined_call_operand.vmem [shape: f32[1,128], index: 4, kind: input, shape index: {}]
  %s5 = inlined_call_operand.vmem [shape: bf16[16,128], index: 5, kind: output, shape index: {}]
  %s6 = sld [smem:[#allocation0]]
  $region38: #{linear_qnet_forward.1} parent=0
    _
  %s8 = ssub.s32 1, %s6
  %s9 = scalar_select 0, %s8, %s6
  $region1: #{linear_qnet_forward.1} parent=0
    #allocation2 [shape = 'u8[32768]{0}', space=vmem, size = 0x8000, scoped, tag = 'input window, operand 1, single buffered']
    #allocation3 [shape = 's32[1]{0}', space=sflag, size = 0x4, scoped, tag = 'scoped memory for linear_qnet_forward.1']
    #allocation4 [shape = 'u8[32768]{0}', space=vmem, size = 0x8000, scoped, tag = 'input window, operand 3, single buffered']
    #allocation5 [shape = 's32[1]{0}', space=sflag, size = 0x4, scoped, tag = 'scoped memory for linear_qnet_forward.1']
    %10 = vsyncpa [#allocation3], 0
    %11 = vsyncpa [#allocation5], 0
    // Predicated region
    $region2: #{linear_qnet_forward.1} parent=1 // pred_check
      _
    $region3: #{linear_qnet_forward.1} parent=1 // pred_check_branch
      %13 = sbr.rel (0) target = $region5
    $region4: #{linear_qnet_forward.1} parent=1 // pred_region
      _
    $region5: #{linear_qnet_forward.1} parent=1 // pred_fallthru
      _
    // Predicated region
    $region6: #{linear_qnet_forward.1} parent=1 // pred_check
      _
    $region7: #{linear_qnet_forward.1} parent=1 // pred_check_branch
      %15 = sbr.rel (0) target = $region9
    $region8: #{linear_qnet_forward.1} parent=1 // pred_region
      %s17 = ssub.s32 1024, 1024
      %18 = vsyncadd [#allocation3], %s17
      %s19 = sshll.u32 [#allocation2], 4
      %s20 = int_to_ptr.vmem [resolvable:$true] %s19
      %25 = dma.hbm_to_vmem [thread:$0]  %s1, 1024, %s20, [#allocation3], 64, 64, 4
    $region9: #{linear_qnet_forward.1} parent=1 // pred_fallthru
      _
    // Predicated region
    $region10: #{linear_qnet_forward.1} parent=1 // pred_check
      _
    $region11: #{linear_qnet_forward.1} parent=1 // pred_check_branch
      %27 = sbr.rel (0) target = $region13
    $region12: #{linear_qnet_forward.1} parent=1 // pred_region
      _
    $region13: #{linear_qnet_forward.1} parent=1 // pred_fallthru
      _
    // Predicated region
    $region14: #{linear_qnet_forward.1} parent=1 // pred_check
      _
    $region15: #{linear_qnet_forward.1} parent=1 // pred_check_branch
      %29 = sbr.rel (0) target = $region17
    $region16: #{linear_qnet_forward.1} parent=1 // pred_region
      %s31 = ssub.s32 1024, 1024
      %32 = vsyncadd [#allocation5], %s31
      %s33 = sshll.u32 [#allocation4], 4
      %s34 = int_to_ptr.vmem [resolvable:$true] %s33
      %39 = dma.hbm_to_vmem [thread:$0]  %s3, 1024, %s34, [#allocation5], 64, 64, 4
    $region17: #{linear_qnet_forward.1} parent=1 // pred_fallthru
      _
    // Predicated region
    $region18: #{linear_qnet_forward.1} parent=1 // pred_check
      _
    $region19: #{linear_qnet_forward.1} parent=1 // pred_check_branch
      %41 = sbr.rel (0) target = $region21
    $region20: #{linear_qnet_forward.1} parent=1 // pred_region
      _
    $region21: #{linear_qnet_forward.1} parent=1 // pred_fallthru
      _
    // Predicated region
    $region22: #{linear_qnet_forward.1} parent=1 // pred_check
      _
    $region23: #{linear_qnet_forward.1} parent=1 // pred_check_branch
      %43 = sbr.rel (0) target = $region25
    $region24: #{linear_qnet_forward.1} parent=1 // pred_region
      %44 = dma.done [#allocation3], 1024
    $region25: #{linear_qnet_forward.1} parent=1 // pred_fallthru
      _
    // Predicated region
    $region26: #{linear_qnet_forward.1} parent=1 // pred_check
      _
    $region27: #{linear_qnet_forward.1} parent=1 // pred_check_branch
      %46 = sbr.rel (0) target = $region29
    $region28: #{linear_qnet_forward.1} parent=1 // pred_region
      %47 = dma.done [#allocation5], 1024
    $region29: #{linear_qnet_forward.1} parent=1 // pred_fallthru
      _
    %v49 = vld [vmem:[%s0] sm:$0xf]
    %v50 = vld [vmem:[%s0 + $0x4] sm:$0xf]
    %v51 = vld [vmem:[#allocation2] sm:$0xf]
    %v52 = vld [vmem:[#allocation2 + $0x4] sm:$0xf]
    %v53 = vld [vmem:[#allocation2 + $0x8] sm:$0xf]
    %v54 = vld [vmem:[#allocation2 + $0xc] sm:$0xf]
    %v55 = vld [vmem:[#allocation2 + $0x10] sm:$0xf]
    %v56 = vld [vmem:[#allocation2 + $0x14] sm:$0xf]
    %v57 = vld [vmem:[#allocation2 + $0x18] sm:$0xf]
    %v58 = vld [vmem:[#allocation2 + $0x1c] sm:$0xf]
    %v59 = vld [vmem:[#allocation2 + $0x20] sm:$0xf]
    %v60 = vld [vmem:[#allocation2 + $0x24] sm:$0xf]
    %v61 = vld [vmem:[#allocation2 + $0x28] sm:$0xf]
    %v62 = vld [vmem:[#allocation2 + $0x2c] sm:$0xf]
    %v63 = vld [vmem:[#allocation2 + $0x30] sm:$0xf]
    %v64 = vld [vmem:[#allocation2 + $0x34] sm:$0xf]
    %v65 = vld [vmem:[#allocation2 + $0x38] sm:$0xf]
    %v66 = vld [vmem:[#allocation2 + $0x3c] sm:$0xf]
    %v67 = vld [vmem:[%s2] sm:$0x1]
    %v69 = vlaneseq
    %v70 = vshrl.u32 %v69, 7
    %v71 = vsub.s32 0, %v70
    %v72 = vrot.slane %v67, %v71
    %v76 = vunpack.c.l.b16 %v49
    %v77 = vunpack.c.l.b16 %v50
    %v78 = vpack.c.b16 %v77, %v76
    %v96 = vunpack.c.l.b16 %v51
    %v97 = vunpack.c.l.b16 %v52
    %v98 = vunpack.c.l.b16 %v53
    %v99 = vunpack.c.l.b16 %v54
    %v100 = vunpack.c.l.b16 %v55
    %v101 = vunpack.c.l.b16 %v56
    %v102 = vunpack.c.l.b16 %v57
    %v103 = vunpack.c.l.b16 %v58
    %v104 = vunpack.c.l.b16 %v59
    %v105 = vunpack.c.l.b16 %v60
    %v106 = vunpack.c.l.b16 %v61
    %v107 = vunpack.c.l.b16 %v62
    %v108 = vunpack.c.l.b16 %v63
    %v109 = vunpack.c.l.b16 %v64
    %v110 = vunpack.c.l.b16 %v65
    %v111 = vunpack.c.l.b16 %v66
    %v112 = vpack.c.b16 %v97, %v96
    %v113 = vpack.c.b16 %v99, %v98
    %v114 = vpack.c.b16 %v101, %v100
    %v115 = vpack.c.b16 %v103, %v102
    %v116 = vpack.c.b16 %v105, %v104
    %v117 = vpack.c.b16 %v107, %v106
    %v118 = vpack.c.b16 %v109, %v108
    %v119 = vpack.c.b16 %v111, %v110
    %128 = vmatprep.subr.bf16.mxu0 0
    %129 = vmatpush1.bf16.msra.mxu0 %v119
    %130 = vmatprep.subr.bf16.mxu0 0
    %131 = vmatpush1.bf16.msra.mxu0 %v118
    %132 = vmatprep.subr.bf16.mxu0 0
    %133 = vmatpush1.bf16.msra.mxu0 %v117
    %134 = vmatprep.subr.bf16.mxu0 0
    %135 = vmatpush1.bf16.msra.mxu0 %v116
    %136 = vmatprep.subr.bf16.mxu0 0
    %137 = vmatpush1.bf16.msra.mxu0 %v115
    %138 = vmatprep.subr.bf16.mxu0 0
    %139 = vmatpush1.bf16.msra.mxu0 %v114
    %140 = vmatprep.subr.bf16.mxu0 0
    %141 = vmatpush1.bf16.msra.mxu0 %v113
    %142 = vmatprep.subr.bf16.mxu0 0
    %143 = vmatpush1.bf16.msra.mxu0 %v112
    %144 = vmatprep.subr.bf16.mxu0 0
    %145 = vmatpush2.bf16.msra.mxu0 0
    %146 = vmatprep.subr.bf16.mxu0 0
    %147 = vmatpush2.bf16.msra.mxu0 0
    %148 = vmatprep.subr.bf16.mxu0 0
    %149 = vmatpush2.bf16.msra.mxu0 0
    %150 = vmatprep.subr.bf16.mxu0 0
    %151 = vmatpush2.bf16.msra.mxu0 0
    %152 = vmatprep.subr.bf16.mxu0 0
    %153 = vmatpush2.bf16.msra.mxu0 0
    %154 = vmatprep.subr.bf16.mxu0 0
    %155 = vmatpush2.bf16.msra.mxu0 0
    %156 = vmatprep.subr.bf16.mxu0 0
    %157 = vmatpush2.bf16.msra.mxu0 0
    %158 = vmatprep.subr.bf16.mxu0 0
    %159 = vmatpush2.bf16.msra.mxu0 0
    %160 = vmatprep.mubr.bf16.mxu0 0
    %161 = vmatmul.mubr.bf16.gmra.mxu0 %v78
    %v162 = vpop.f32.mrf.mxu0
    %v163 = vadd.f32 %v72, %v162
    %v164 = vpop.f32.mrf.mxu0
    %v165 = vpop.f32.mrf.mxu0
    %v166 = vadd.f32 %v72, %v165
    %v167 = vpop.f32.mrf.mxu0
    %168 = vdwg.mxu0
    %v169 = vmax.f32 %v163, 0.0
    %v170 = vmax.f32 %v166, 0.0
    %v171 = vpack.c.bf16 %v170, %v169
    %v172 = vld [vmem:[#allocation4] sm:$0xf]
    %v173 = vld [vmem:[#allocation4 + $0x4] sm:$0xf]
    %v174 = vld [vmem:[#allocation4 + $0x8] sm:$0xf]
    %v175 = vld [vmem:[#allocation4 + $0xc] sm:$0xf]
    %v176 = vld [vmem:[#allocation4 + $0x10] sm:$0xf]
    %v177 = vld [vmem:[#allocation4 + $0x14] sm:$0xf]
    %v178 = vld [vmem:[#allocation4 + $0x18] sm:$0xf]
    %v179 = vld [vmem:[#allocation4 + $0x1c] sm:$0xf]
    %v180 = vld [vmem:[#allocation4 + $0x20] sm:$0xf]
    %v181 = vld [vmem:[#allocation4 + $0x24] sm:$0xf]
    %v182 = vld [vmem:[#allocation4 + $0x28] sm:$0xf]
    %v183 = vld [vmem:[#allocation4 + $0x2c] sm:$0xf]
    %v184 = vld [vmem:[#allocation4 + $0x30] sm:$0xf]
    %v185 = vld [vmem:[#allocation4 + $0x34] sm:$0xf]
    %v186 = vld [vmem:[#allocation4 + $0x38] sm:$0xf]
    %v187 = vld [vmem:[#allocation4 + $0x3c] sm:$0xf]
    %v188 = vld [vmem:[%s4] sm:$0x1]
    %v190 = vlaneseq
    %v191 = vshrl.u32 %v190, 7
    %v192 = vsub.s32 0, %v191
    %v193 = vrot.slane %v188, %v192
    %v211 = vunpack.c.l.b16 %v172
    %v212 = vunpack.c.l.b16 %v173
    %v213 = vunpack.c.l.b16 %v174
    %v214 = vunpack.c.l.b16 %v175
    %v215 = vunpack.c.l.b16 %v176
    %v216 = vunpack.c.l.b16 %v177
    %v217 = vunpack.c.l.b16 %v178
    %v218 = vunpack.c.l.b16 %v179
    %v219 = vunpack.c.l.b16 %v180
    %v220 = vunpack.c.l.b16 %v181
    %v221 = vunpack.c.l.b16 %v182
    %v222 = vunpack.c.l.b16 %v183
    %v223 = vunpack.c.l.b16 %v184
    %v224 = vunpack.c.l.b16 %v185
    %v225 = vunpack.c.l.b16 %v186
    %v226 = vunpack.c.l.b16 %v187
    %v227 = vpack.c.b16 %v212, %v211
    %v228 = vpack.c.b16 %v214, %v213
    %v229 = vpack.c.b16 %v216, %v215
    %v230 = vpack.c.b16 %v218, %v217
    %v231 = vpack.c.b16 %v220, %v219
    %v232 = vpack.c.b16 %v222, %v221
    %v233 = vpack.c.b16 %v224, %v223
    %v234 = vpack.c.b16 %v226, %v225
    %243 = vmatprep.subr.bf16.mxu0 0
    %244 = vmatpush1.bf16.msra.mxu0 %v234
    %245 = vmatprep.subr.bf16.mxu0 0
    %246 = vmatpush1.bf16.msra.mxu0 %v233
    %247 = vmatprep.subr.bf16.mxu0 0
    %248 = vmatpush1.bf16.msra.mxu0 %v232
    %249 = vmatprep.subr.bf16.mxu0 0
    %250 = vmatpush1.bf16.msra.mxu0 %v231
    %251 = vmatprep.subr.bf16.mxu0 0
    %252 = vmatpush1.bf16.msra.mxu0 %v230
    %253 = vmatprep.subr.bf16.mxu0 0
    %254 = vmatpush1.bf16.msra.mxu0 %v229
    %255 = vmatprep.subr.bf16.mxu0 0
    %256 = vmatpush1.bf16.msra.mxu0 %v228
    %257 = vmatprep.subr.bf16.mxu0 0
    %258 = vmatpush1.bf16.msra.mxu0 %v227
    %259 = vmatprep.subr.bf16.mxu0 0
    %260 = vmatpush2.bf16.msra.mxu0 0
    %261 = vmatprep.subr.bf16.mxu0 0
    %262 = vmatpush2.bf16.msra.mxu0 0
    %263 = vmatprep.subr.bf16.mxu0 0
    %264 = vmatpush2.bf16.msra.mxu0 0
    %265 = vmatprep.subr.bf16.mxu0 0
    %266 = vmatpush2.bf16.msra.mxu0 0
    %267 = vmatprep.subr.bf16.mxu0 0
    %268 = vmatpush2.bf16.msra.mxu0 0
    %269 = vmatprep.subr.bf16.mxu0 0
    %270 = vmatpush2.bf16.msra.mxu0 0
    %271 = vmatprep.subr.bf16.mxu0 0
    %272 = vmatpush2.bf16.msra.mxu0 0
    %273 = vmatprep.subr.bf16.mxu0 0
    %274 = vmatpush2.bf16.msra.mxu0 0
    %275 = vmatprep.mubr.bf16.mxu0 0
    %276 = vmatmul.mubr.bf16.gmra.mxu0 %v171
    %v277 = vpop.f32.mrf.mxu0
    %v278 = vadd.f32 %v193, %v277
    %v279 = vpop.f32.mrf.mxu0
    %v280 = vpop.f32.mrf.mxu0
    %v281 = vadd.f32 %v193, %v280
    %v282 = vpop.f32.mrf.mxu0
    %283 = vdwg.mxu0
    %v284 = vpack.c.bf16 %v281, %v278
    %v286 = vunpack.c.l.b16 %v284
    %v287 = vunpack.c.h.b16 %v284
    %v288 = vpack.c.b16 %v286, %v286
    %v289 = vpack.c.b16 %v287, %v287
    %292 = vst [vmem:[%s5] sm:$0xf] %v288
    %293 = vst [vmem:[%s5 + $0x4] sm:$0xf] %v289
    // Predicated region
    $region30: #{linear_qnet_forward.1} parent=1 // pred_check
      _
    $region31: #{linear_qnet_forward.1} parent=1 // pred_check_branch
      %295 = sbr.rel (0) target = $region33
    $region32: #{linear_qnet_forward.1} parent=1 // pred_region
      _
    $region33: #{linear_qnet_forward.1} parent=1 // pred_fallthru
      _
    // Predicated region
    $region34: #{linear_qnet_forward.1} parent=1 // pred_check
      _
    $region35: #{linear_qnet_forward.1} parent=1 // pred_check_branch
      %297 = sbr.rel (0) target = $region37
    $region36: #{linear_qnet_forward.1} parent=1 // pred_region
      _
    $region37: #{linear_qnet_forward.1} parent=1 // pred_fallthru
      _
    %298 = vsyncpa [#allocation3], 1
    %299 = vsyncpa [#allocation5], 1

</llo_original>
